<compile_context>
chip_gen: v6e
topology: v6e:2x2x1
jax: 0.10.0
libtpu: 0.0.40
codegen_flags: <defaults>
</compile_context>

<pallas_src>
from functools import partial

import jax
import jax.numpy as jnp
from jax.experimental import pallas as pl
from jax.experimental.pallas import tpu as pltpu


ARGS_DIM = {"df": 1, "loc": 1, "scale": 1}
D_TOTAL = sum(ARGS_DIM.values())  # 3
LANES = 128                       # padded output-column count (one lane tile)


def _softplus(z):
    # numerically stable softplus, same as torch.nn.functional.softplus
    return jnp.logaddexp(z, 0.0)


def param_proj_kernel(x_ref, w_ref, b_ref, out_ref):
    # x_ref:   (tm, H)      f32, VMEM row tile of the flattened input
    # w_ref:   (H, LANES)   f32, VMEM; real weight columns are 0..D_TOTAL-1, rest zero
    # b_ref:   (D_TOTAL,)   f32, SMEM (scalar bias per arg)
    # out_ref: (D_TOTAL, tm) f32, lane-dense output block of the (3, N_pad) slab
    y = jnp.dot(x_ref[...], w_ref[...], preferred_element_type=jnp.float32)  # (tm, LANES)
    yt = y.T                                   # (LANES, tm): aligned XLU transpose
    df_raw = yt[0:1, :] + b_ref[0]
    loc_raw = yt[1:2, :] + b_ref[1]
    scale_raw = yt[2:3, :] + b_ref[2]
    # domain_map applied in-kernel, lane-dense stores
    out_ref[0:1, :] = 2.0 + _softplus(df_raw)
    out_ref[1:2, :] = loc_raw
    out_ref[2:3, :] = _softplus(scale_raw)


def _round_up(a, b):
    return (a + b - 1) // b * b


@partial(jax.jit, static_argnames=("tm",))
def _param_proj_call(x2d_pad, w_pad, b, *, tm):
    n_pad, h = x2d_pad.shape
    grid = (n_pad // tm,)

    # VMEM working-set estimate (double-buffered) -> raise the scoped limit,
    # but stay well under v7x's 64 MiB physical VMEM.
    est = (2 * tm * h * 4            # x row tiles (double buffered)
           + 2 * h * LANES * 4       # padded weight slab
           + 2 * 8 * tm * 4          # output blocks (sublane-padded)
           + 2 * tm * LANES * 4      # matmul result + transpose temporaries
           + (1 << 20))              # slack
    vmem_limit = int(min(48 << 20, max(32 << 20, int(est * 1.4))))

    return pl.pallas_call(
        param_proj_kernel,
        out_shape=jax.ShapeDtypeStruct((D_TOTAL, n_pad), jnp.float32),
        grid_spec=pltpu.PrefetchScalarGridSpec(
            num_scalar_prefetch=0,
            grid=grid,
            in_specs=[
                pl.BlockSpec((tm, h), lambda i: (i, 0)),       # x row tile
                pl.BlockSpec((h, LANES), lambda i: (0, 0)),    # fused, padded W (resident)
                pl.BlockSpec(memory_space=pltpu.MemorySpace.SMEM),  # bias scalars
            ],
            out_specs=pl.BlockSpec((D_TOTAL, tm), lambda i: (0, i)),
        ),
        compiler_params=pltpu.CompilerParams(
            dimension_semantics=("parallel",),   # row tiles split across TCs on v7x
            vmem_limit_bytes=vmem_limit,
        ),
    )(x2d_pad, w_pad, b)


def parameter_projection(x, w_cat, b_cat, *, tm=1024):
    """x: (B, T, H) f32; w_cat: (H, D_TOTAL); b_cat: (D_TOTAL,).

    Returns (df, loc, scale), each (B, T) — size-1 arg dims squeezed by domain_map.
    """
    B, T, H = x.shape
    N = B * T

    # --- static tile selection (trace/Python time) ---
    tm = max(128, (tm // 128) * 128)
    tm = min(tm, _round_up(N, 128))          # don't over-pad tiny inputs
    # keep the double-buffered working set <= ~34 MiB (safe on v7x's 64 MiB VMEM)
    def _est(t):
        return 2 * t * H * 4 + 2 * H * LANES * 4 + 2 * 8 * t * 4 + 2 * t * LANES * 4
    while tm > 128 and _est(tm) > (34 << 20):
        tm -= 128
    n_pad = _round_up(N, tm)

    # --- host-side layout plumbing (no extra HBM passes over x beyond the pad) ---
    x2d = x.reshape(N, H).astype(jnp.float32)
    x2d_pad = jnp.pad(x2d, ((0, n_pad - N), (0, 0)))
    w_pad = jnp.pad(w_cat.astype(jnp.float32), ((0, 0), (0, LANES - D_TOTAL)))
    b = b_cat.astype(jnp.float32)

    out = _param_proj_call(x2d_pad, w_pad, b, tm=tm)   # (3, n_pad), lane-dense

    df = out[0, :N].reshape(B, T)
    loc = out[1, :N].reshape(B, T)
    scale = out[2, :N].reshape(B, T)
    return df, loc, scale


def init_params(key, in_features):
    """Deterministic nn.Linear-style init: U(-1/sqrt(H), 1/sqrt(H)) per head,
    concatenated along the output dim."""
    bound = 1.0 / jnp.sqrt(jnp.float32(in_features))
    ws, bs = [], []
    for _name, dim in ARGS_DIM.items():
        key, kw, kb = jax.random.split(key, 3)
        ws.append(jax.random.uniform(kw, (in_features, dim), jnp.float32, -bound, bound))
        bs.append(jax.random.uniform(kb, (dim,), jnp.float32, -bound, bound))
    w_cat = jnp.concatenate(ws, axis=1)  # (H, D_TOTAL)
    b_cat = jnp.concatenate(bs, axis=0)  # (D_TOTAL,)
    return w_cat, b_cat


def reference(x, w_cat, b_cat):
    """Plain-JAX reference of the PyTorch forward for verification."""
    y = jnp.einsum("bth,hd->btd", x, w_cat) + b_cat
    df = 2.0 + jax.nn.softplus(y[..., 0])
    loc = y[..., 1]
    scale = jax.nn.softplus(y[..., 2])
    return df, loc, scale


if __name__ == "__main__":
    B, T, H = 2, 8, 32  # batch, seq, in_features
    key = jax.random.PRNGKey(0)
    kx, kp = jax.random.split(key)

    x = jax.random.normal(kx, (B, T, H), dtype=jnp.float32)
    w_cat, b_cat = init_params(kp, H)

    df, loc, scale = parameter_projection(x, w_cat, b_cat)
    jax.block_until_ready((df, loc, scale))

    df_r, loc_r, scale_r = reference(x, w_cat, b_cat)
    assert df.shape == (B, T) and loc.shape == (B, T) and scale.shape == (B, T)
    assert jnp.allclose(df, df_r, atol=1e-5, rtol=1e-5)
    assert jnp.allclose(loc, loc_r, atol=1e-5, rtol=1e-5)
    assert jnp.allclose(scale, scale_r, atol=1e-5, rtol=1e-5)

    print("KERNEL_OK")
</pallas_src>

<mosaic_0001>
module attributes {stable_mosaic.version = 11 : i64} {
  func.func @param_proj_kernel(%arg0: i32, %arg1: memref<128x32xf32, #tpu.memory_space<vmem>>, %arg2: memref<32x128xf32, #tpu.memory_space<vmem>>, %arg3: memref<3xf32, #tpu.memory_space<smem>>, %arg4: memref<3x128xf32, #tpu.memory_space<vmem>>) attributes {dimension_semantics = [#tpu.dimension_semantics<parallel>], iteration_bounds = array<i64: 1>, scalar_prefetch = 0 : i64, scratch_operands = 0 : i64, tpu.core_type = #tpu.core_type<tc>, window_params = [{transform_indices = @transform_0, window_bounds = array<i64: 128, 32>}, {pipeline_mode = #tpu.pipeline_mode<synchronous>, transform_indices = @transform_1, window_bounds = array<i64: 32, 128>}, {transform_indices = @transform_2, window_bounds = array<i64: 3>}, {transform_indices = @transform_3, window_bounds = array<i64: 3, 128>}]} {
    %c0 = arith.constant 0 : index
    %c0_0 = arith.constant 0 : index
    %0 = vector.load %arg1[%c0, %c0_0] : memref<128x32xf32, #tpu.memory_space<vmem>>, vector<128x32xf32>
    %c0_1 = arith.constant 0 : index
    %c0_2 = arith.constant 0 : index
    %1 = vector.load %arg2[%c0_1, %c0_2] : memref<32x128xf32, #tpu.memory_space<vmem>>, vector<32x128xf32>
    %cst = arith.constant dense<0.000000e+00> : vector<128x128xf32>
    %2 = tpu.matmul %0, %1, %cst {dimension_numbers = #tpu.dot_dimension_numbers<[1], [0], [0], [1], [0, 0, 1, 1], [], []>} : vector<128x32xf32>, vector<32x128xf32>, vector<128x128xf32> -> vector<128x128xf32>
    %3 = tpu.transpose %2, [1, 0] : vector<128x128xf32> -> vector<128x128xf32>
    %4 = vector.extract_strided_slice %3 {offsets = [0, 0], sizes = [1, 128], strides = [1, 1]} : vector<128x128xf32> to vector<1x128xf32>
    %c0_3 = arith.constant 0 : index
    %5 = memref.load %arg3[%c0_3] : memref<3xf32, #tpu.memory_space<smem>>
    %6 = vector.broadcast %5 : f32 to vector<1x128xf32>
    %7 = arith.addf %4, %6 : vector<1x128xf32>
    %8 = vector.extract_strided_slice %3 {offsets = [1, 0], sizes = [1, 128], strides = [1, 1]} : vector<128x128xf32> to vector<1x128xf32>
    %c1 = arith.constant 1 : index
    %9 = memref.load %arg3[%c1] : memref<3xf32, #tpu.memory_space<smem>>
    %10 = vector.broadcast %9 : f32 to vector<1x128xf32>
    %11 = arith.addf %8, %10 : vector<1x128xf32>
    %12 = vector.extract_strided_slice %3 {offsets = [2, 0], sizes = [1, 128], strides = [1, 1]} : vector<128x128xf32> to vector<1x128xf32>
    %c2 = arith.constant 2 : index
    %13 = memref.load %arg3[%c2] : memref<3xf32, #tpu.memory_space<smem>>
    %14 = vector.broadcast %13 : f32 to vector<1x128xf32>
    %15 = arith.addf %12, %14 : vector<1x128xf32>
    %cst_4 = arith.constant 0.000000e+00 : f32
    %16 = vector.broadcast %cst_4 : f32 to vector<1x128xf32>
    %17 = arith.maximumf %7, %16 : vector<1x128xf32>
    %18 = vector.broadcast %cst_4 : f32 to vector<1x128xf32>
    %19 = arith.subf %7, %18 : vector<1x128xf32>
    %20 = arith.cmpf one, %19, %19 : vector<1x128xf32>
    %21 = vector.broadcast %cst_4 : f32 to vector<1x128xf32>
    %22 = arith.addf %7, %21 : vector<1x128xf32>
    %23 = math.absf %19 : vector<1x128xf32>
    %cst_5 = arith.constant 0.000000e+00 : f32
    %24 = vector.broadcast %cst_5 : f32 to vector<1x128xf32>
    %25 = arith.subf %24, %23 : vector<1x128xf32>
    %26 = math.exp %25 : vector<1x128xf32>
    %27 = math.log1p %26 : vector<1x128xf32>
    %28 = arith.addf %17, %27 : vector<1x128xf32>
    %29 = arith.select %20, %22, %28 : vector<1x128xi1>, vector<1x128xf32>
    %cst_6 = arith.constant 2.000000e+00 : f32
    %30 = vector.broadcast %cst_6 : f32 to vector<1x128xf32>
    %31 = arith.addf %30, %29 : vector<1x128xf32>
    %c0_7 = arith.constant 0 : index
    %c0_8 = arith.constant 0 : index
    %32 = vector.load %arg4[%c0_7, %c0_8] : memref<3x128xf32, #tpu.memory_space<vmem>>, vector<1x128xf32>
    tpu.vector_store %arg4[%c0_7, %c0_8], %31 {strides = array<i32>} : memref<3x128xf32, #tpu.memory_space<vmem>>, vector<1x128xf32>,
    %c1_9 = arith.constant 1 : index
    %c0_10 = arith.constant 0 : index
    %33 = vector.load %arg4[%c1_9, %c0_10] : memref<3x128xf32, #tpu.memory_space<vmem>>, vector<1x128xf32>
    tpu.vector_store %arg4[%c1_9, %c0_10], %11 {strides = array<i32>} : memref<3x128xf32, #tpu.memory_space<vmem>>, vector<1x128xf32>,
    %cst_11 = arith.constant 0.000000e+00 : f32
    %34 = vector.broadcast %cst_11 : f32 to vector<1x128xf32>
    %35 = arith.maximumf %15, %34 : vector<1x128xf32>
    %36 = vector.broadcast %cst_11 : f32 to vector<1x128xf32>
    %37 = arith.subf %15, %36 : vector<1x128xf32>
    %38 = arith.cmpf one, %37, %37 : vector<1x128xf32>
    %39 = vector.broadcast %cst_11 : f32 to vector<1x128xf32>
    %40 = arith.addf %15, %39 : vector<1x128xf32>
    %41 = math.absf %37 : vector<1x128xf32>
    %cst_12 = arith.constant 0.000000e+00 : f32
    %42 = vector.broadcast %cst_12 : f32 to vector<1x128xf32>
    %43 = arith.subf %42, %41 : vector<1x128xf32>
    %44 = math.exp %43 : vector<1x128xf32>
    %45 = math.log1p %44 : vector<1x128xf32>
    %46 = arith.addf %35, %45 : vector<1x128xf32>
    %47 = arith.select %38, %40, %46 : vector<1x128xi1>, vector<1x128xf32>
    %c2_13 = arith.constant 2 : index
    %c0_14 = arith.constant 0 : index
    %48 = vector.load %arg4[%c2_13, %c0_14] : memref<3x128xf32, #tpu.memory_space<vmem>>, vector<1x128xf32>
    tpu.vector_store %arg4[%c2_13, %c0_14], %47 {strides = array<i32>} : memref<3x128xf32, #tpu.memory_space<vmem>>, vector<1x128xf32>,
    return
  }
  func.func @transform_0(%arg0: i32) -> (i32, i32) {
    %c0_i32 = arith.constant 0 : i32
    %c0_i32_0 = arith.constant 0 : i32
    return %arg0, %c0_i32 : i32, i32
  }
  func.func @transform_1(%arg0: i32) -> (i32, i32) {
    %c0_i32 = arith.constant 0 : i32
    %c0_i32_0 = arith.constant 0 : i32
    %c0_i32_1 = arith.constant 0 : i32
    return %c0_i32, %c0_i32_0 : i32, i32
  }
  func.func @transform_2(%arg0: i32) -> i32 {
    %c0_i32 = arith.constant 0 : i32
    %c0_i32_0 = arith.constant 0 : i32
    return %c0_i32 : i32
  }
  func.func @transform_3(%arg0: i32) -> (i32, i32) {
    %c0_i32 = arith.constant 0 : i32
    %c0_i32_0 = arith.constant 0 : i32
    return %c0_i32, %arg0 : i32, i32
  }
}

</mosaic_0001>

<llo_original>
// kernel: _param_proj_call.1
$region0: #{_param_proj_call.1}
  #allocation0 [shape = 'u32[]', space=smem, size = 0x4, offset = 0x4, fixed_abs, tag = 'smem constant byte address 0x4 - core index']
  #allocation1 [shape = 'u32[144,128]{1,0:T(1,128)}', space=vmem, size = 0x12000, scoped, tag = 'internal scratch']
  %s0 = inlined_call_operand.vmem [shape: f32[128,32], index: 0, kind: input, shape index: {}]
  %s1 = inlined_call_operand.vmem [shape: f32[32,128], index: 1, kind: input, shape index: {}]
  %s2 = inlined_call_operand.vmem [shape: f32[3], index: 2, kind: input, shape index: {}]
  %s3 = inlined_call_operand.hbm [shape: f32[3,128], index: 3, kind: output, shape index: {}]
  %s4 = sld [smem:[#allocation0]]
  $region26: #{_param_proj_call.1} parent=0
    _
  %s6 = ssub.s32 1, %s4
  %s7 = scalar_select 0, %s6, %s4
  $region1: #{_param_proj_call.1} parent=0
    #allocation2 [shape = 'u8[512]{0}', space=smem, size = 0x200, scoped, tag = 'input window, operand 2, single buffered']
    #allocation3 [shape = 's32[1]{0}', space=sflag, size = 0x4, scoped, tag = 'scoped memory for _param_proj_call.1']
    #allocation4 [shape = 's32[1]{0}', space=sflag, size = 0x4, scoped, tag = 'scoped memory for _param_proj_call.1']
    #allocation5 [shape = 'u8[2048]{0}', space=vmem, size = 0x800, scoped, tag = 'output window, operand 0, single buffered']
    %8 = vsyncpa [#allocation4], 0
    %9 = vsyncpa [#allocation3], 0
    // Predicated region
    $region2: #{_param_proj_call.1} parent=1 // pred_check
      _
    $region3: #{_param_proj_call.1} parent=1 // pred_check_branch
      %11 = sbr.rel (0) target = $region5
    $region4: #{_param_proj_call.1} parent=1 // pred_region
      _
    $region5: #{_param_proj_call.1} parent=1 // pred_fallthru
      _
    // Predicated region
    $region6: #{_param_proj_call.1} parent=1 // pred_check
      _
    $region7: #{_param_proj_call.1} parent=1 // pred_check_branch
      %13 = sbr.rel (0) target = $region9
    $region8: #{_param_proj_call.1} parent=1 // pred_region
      _
    $region9: #{_param_proj_call.1} parent=1 // pred_fallthru
      _
    // Predicated region
    $region10: #{_param_proj_call.1} parent=1 // pred_check
      _
    $region11: #{_param_proj_call.1} parent=1 // pred_check_branch
      %15 = sbr.rel (0) target = $region13
    $region12: #{_param_proj_call.1} parent=1 // pred_region
      %s17 = ssub.s32 16, 16
      %18 = vsyncadd [#allocation4], %s17
      %s20 = sshll.u32 %s2, 4
      %s21 = int_to_ptr.vmem [resolvable:$true] %s20
      %23 = dma.vmem_to_smem %s21, 16, [#allocation2], [#allocation4]
    $region13: #{_param_proj_call.1} parent=1 // pred_fallthru
      _
    // Predicated region
    $region14: #{_param_proj_call.1} parent=1 // pred_check
      _
    $region15: #{_param_proj_call.1} parent=1 // pred_check_branch
      %25 = sbr.rel (0) target = $region17
    $region16: #{_param_proj_call.1} parent=1 // pred_region
      %26 = dma.done [#allocation4], 16
    $region17: #{_param_proj_call.1} parent=1 // pred_fallthru
      _
    %27 = sfence
    %v28 = vld [vmem:[%s0] sm:$0xff]
    %v29 = vld [vmem:[%s0 + $0x8] sm:$0xff]
    %v30 = vld [vmem:[%s0 + $0x10] sm:$0xff]
    %v31 = vld [vmem:[%s0 + $0x18] sm:$0xff]
    %v32 = vld [vmem:[%s0 + $0x20] sm:$0xff]
    %v33 = vld [vmem:[%s0 + $0x28] sm:$0xff]
    %v34 = vld [vmem:[%s0 + $0x30] sm:$0xff]
    %v35 = vld [vmem:[%s0 + $0x38] sm:$0xff]
    %v36 = vld [vmem:[%s0 + $0x40] sm:$0xff]
    %v37 = vld [vmem:[%s0 + $0x48] sm:$0xff]
    %v38 = vld [vmem:[%s0 + $0x50] sm:$0xff]
    %v39 = vld [vmem:[%s0 + $0x58] sm:$0xff]
    %v40 = vld [vmem:[%s0 + $0x60] sm:$0xff]
    %v41 = vld [vmem:[%s0 + $0x68] sm:$0xff]
    %v42 = vld [vmem:[%s0 + $0x70] sm:$0xff]
    %v43 = vld [vmem:[%s0 + $0x78] sm:$0xff]
    %v44 = vld [vmem:[%s1] sm:$0xff]
    %v45 = vld [vmem:[%s1 + $0x8] sm:$0xff]
    %v46 = vld [vmem:[%s1 + $0x10] sm:$0xff]
    %v47 = vld [vmem:[%s1 + $0x18] sm:$0xff]
    %vm48 = vcmask 261120
    %v50 = vsel %vm48, %v28, 0
    %v53 = vsel %vm48, %v29, 0
    %v56 = vsel %vm48, %v30, 0
    %v59 = vsel %vm48, %v31, 0
    %v62 = vsel %vm48, %v32, 0
    %v65 = vsel %vm48, %v33, 0
    %v68 = vsel %vm48, %v34, 0
    %v71 = vsel %vm48, %v35, 0
    %v74 = vsel %vm48, %v36, 0
    %v77 = vsel %vm48, %v37, 0
    %v80 = vsel %vm48, %v38, 0
    %v83 = vsel %vm48, %v39, 0
    %v86 = vsel %vm48, %v40, 0
    %v89 = vsel %vm48, %v41, 0
    %v92 = vsel %vm48, %v42, 0
    %v95 = vsel %vm48, %v43, 0
    %97 = vmatprep.subr.mxu0 0.0
    %98 = vmatpush1.msra.mxu0 0.0
    %99 = vmatprep.subr.mxu0 0.0
    %100 = vmatpush1.msra.mxu0 0.0
    %101 = vmatprep.subr.mxu0 0.0
    %102 = vmatpush1.msra.mxu0 0.0
    %103 = vmatprep.subr.mxu0 0.0
    %104 = vmatpush1.msra.mxu0 0.0
    %105 = vmatprep.subr.mxu0 0.0
    %106 = vmatpush1.msra.mxu0 0.0
    %107 = vmatprep.subr.mxu0 0.0
    %108 = vmatpush1.msra.mxu0 0.0
    %109 = vmatprep.subr.mxu0 0.0
    %110 = vmatpush1.msra.mxu0 0.0
    %111 = vmatprep.subr.mxu0 0.0
    %112 = vmatpush1.msra.mxu0 0.0
    %113 = vmatprep.subr.mxu0 0.0
    %114 = vmatpush1.msra.mxu0 0.0
    %115 = vmatprep.subr.mxu0 0.0
    %116 = vmatpush1.msra.mxu0 0.0
    %117 = vmatprep.subr.mxu0 0.0
    %118 = vmatpush1.msra.mxu0 0.0
    %119 = vmatprep.subr.mxu0 0.0
    %120 = vmatpush1.msra.mxu0 0.0
    %121 = vmatprep.subr.mxu0 0.0
    %122 = vmatpush1.msra.mxu0 %v47
    %123 = vmatprep.subr.mxu0 0.0
    %124 = vmatpush1.msra.mxu0 %v46
    %125 = vmatprep.subr.mxu0 0.0
    %126 = vmatpush1.msra.mxu0 %v45
    %127 = vmatprep.subr.mxu0 0.0
    %128 = vmatpush1.msra.mxu0 %v44
    %129 = vmatprep.subr.mxu0 0.0
    %130 = vmatpush2.msra.mxu0 0.0
    %131 = vmatprep.subr.mxu0 0.0
    %132 = vmatpush2.msra.mxu0 0.0
    %133 = vmatprep.subr.mxu0 0.0
    %134 = vmatpush2.msra.mxu0 0.0
    %135 = vmatprep.subr.mxu0 0.0
    %136 = vmatpush2.msra.mxu0 0.0
    %137 = vmatprep.subr.mxu0 0.0
    %138 = vmatpush2.msra.mxu0 0.0
    %139 = vmatprep.subr.mxu0 0.0
    %140 = vmatpush2.msra.mxu0 0.0
    %141 = vmatprep.subr.mxu0 0.0
    %142 = vmatpush2.msra.mxu0 0.0
    %143 = vmatprep.subr.mxu0 0.0
    %144 = vmatpush2.msra.mxu0 0.0
    %145 = vmatprep.subr.mxu0 0.0
    %146 = vmatpush2.msra.mxu0 0.0
    %147 = vmatprep.subr.mxu0 0.0
    %148 = vmatpush2.msra.mxu0 0.0
    %149 = vmatprep.subr.mxu0 0.0
    %150 = vmatpush2.msra.mxu0 0.0
    %151 = vmatprep.subr.mxu0 0.0
    %152 = vmatpush2.msra.mxu0 0.0
    %153 = vmatprep.subr.mxu0 0.0
    %154 = vmatpush2.msra.mxu0 0.0
    %155 = vmatprep.subr.mxu0 0.0
    %156 = vmatpush2.msra.mxu0 0.0
    %157 = vmatprep.subr.mxu0 0.0
    %158 = vmatpush2.msra.mxu0 0.0
    %159 = vmatprep.subr.mxu0 0.0
    %160 = vmatpush2.msra.mxu0 0.0
    %161 = vmatprep.mubr.f32.mxu0 0.0
    %162 = vmatmul.mubr.f32.gmra.mxu0 %v50
    %v163 = vpop.f32.mrf.mxu0
    %v164 = vadd.f32 0.0, %v163
    %v165 = vpop.f32.mrf.mxu0
    %166 = vmatprep.mubr.f32.mxu0 0.0
    %167 = vmatmul.mubr.f32.gmra.mxu0 %v53
    %v168 = vpop.f32.mrf.mxu0
    %v169 = vadd.f32 0.0, %v168
    %v170 = vpop.f32.mrf.mxu0
    %171 = vmatprep.mubr.f32.mxu0 0.0
    %172 = vmatmul.mubr.f32.gmra.mxu0 %v56
    %v173 = vpop.f32.mrf.mxu0
    %v174 = vadd.f32 0.0, %v173
    %v175 = vpop.f32.mrf.mxu0
    %176 = vmatprep.mubr.f32.mxu0 0.0
    %177 = vmatmul.mubr.f32.gmra.mxu0 %v59
    %v178 = vpop.f32.mrf.mxu0
    %v179 = vadd.f32 0.0, %v178
    %v180 = vpop.f32.mrf.mxu0
    %181 = vmatprep.mubr.f32.mxu0 0.0
    %182 = vmatmul.mubr.f32.gmra.mxu0 %v62
    %v183 = vpop.f32.mrf.mxu0
    %v184 = vadd.f32 0.0, %v183
    %v185 = vpop.f32.mrf.mxu0
    %186 = vmatprep.mubr.f32.mxu0 0.0
    %187 = vmatmul.mubr.f32.gmra.mxu0 %v65
    %v188 = vpop.f32.mrf.mxu0
    %v189 = vadd.f32 0.0, %v188
    %v190 = vpop.f32.mrf.mxu0
    %191 = vmatprep.mubr.f32.mxu0 0.0
    %192 = vmatmul.mubr.f32.gmra.mxu0 %v68
    %v193 = vpop.f32.mrf.mxu0
    %v194 = vadd.f32 0.0, %v193
    %v195 = vpop.f32.mrf.mxu0
    %196 = vmatprep.mubr.f32.mxu0 0.0
    %197 = vmatmul.mubr.f32.gmra.mxu0 %v71
    %v198 = vpop.f32.mrf.mxu0
    %v199 = vadd.f32 0.0, %v198
    %v200 = vpop.f32.mrf.mxu0
    %201 = vmatprep.mubr.f32.mxu0 0.0
    %202 = vmatmul.mubr.f32.gmra.mxu0 %v74
    %v203 = vpop.f32.mrf.mxu0
    %v204 = vadd.f32 0.0, %v203
    %v205 = vpop.f32.mrf.mxu0
    %206 = vmatprep.mubr.f32.mxu0 0.0
    %207 = vmatmul.mubr.f32.gmra.mxu0 %v77
    %v208 = vpop.f32.mrf.mxu0
    %v209 = vadd.f32 0.0, %v208
    %v210 = vpop.f32.mrf.mxu0
    %211 = vmatprep.mubr.f32.mxu0 0.0
    %212 = vmatmul.mubr.f32.gmra.mxu0 %v80
    %v213 = vpop.f32.mrf.mxu0
    %v214 = vadd.f32 0.0, %v213
    %v215 = vpop.f32.mrf.mxu0
    %216 = vmatprep.mubr.f32.mxu0 0.0
    %217 = vmatmul.mubr.f32.gmra.mxu0 %v83
    %v218 = vpop.f32.mrf.mxu0
    %v219 = vadd.f32 0.0, %v218
    %v220 = vpop.f32.mrf.mxu0
    %221 = vmatprep.mubr.f32.mxu0 0.0
    %222 = vmatmul.mubr.f32.gmra.mxu0 %v86
    %v223 = vpop.f32.mrf.mxu0
    %v224 = vadd.f32 0.0, %v223
    %v225 = vpop.f32.mrf.mxu0
    %226 = vmatprep.mubr.f32.mxu0 0.0
    %227 = vmatmul.mubr.f32.gmra.mxu0 %v89
    %v228 = vpop.f32.mrf.mxu0
    %v229 = vadd.f32 0.0, %v228
    %v230 = vpop.f32.mrf.mxu0
    %231 = vmatprep.mubr.f32.mxu0 0.0
    %232 = vmatmul.mubr.f32.gmra.mxu0 %v92
    %v233 = vpop.f32.mrf.mxu0
    %v234 = vadd.f32 0.0, %v233
    %v235 = vpop.f32.mrf.mxu0
    %236 = vmatprep.mubr.f32.mxu0 0.0
    %237 = vmatmul.mubr.f32.gmra.mxu0 %v95
    %v238 = vpop.f32.mrf.mxu0
    %v239 = vadd.f32 0.0, %v238
    %v240 = vpop.f32.mrf.mxu0
    %241 = vdwg.mxu0
    %242 = vxpose.xlu0.b32.start [1/16] %v164, 128
    %243 = vxpose.xlu0.b32.cont [2/16] %v169, 128
    %244 = vxpose.xlu0.b32.cont [3/16] %v174, 128
    %245 = vxpose.xlu0.b32.cont [4/16] %v179, 128
    %246 = vxpose.xlu0.b32.cont [5/16] %v184, 128
    %247 = vxpose.xlu0.b32.cont [6/16] %v189, 128
    %248 = vxpose.xlu0.b32.cont [7/16] %v194, 128
    %249 = vxpose.xlu0.b32.cont [8/16] %v199, 128
    %250 = vxpose.xlu0.b32.cont [9/16] %v204, 128
    %251 = vxpose.xlu0.b32.cont [10/16] %v209, 128
    %252 = vxpose.xlu0.b32.cont [11/16] %v214, 128
    %253 = vxpose.xlu0.b32.cont [12/16] %v219, 128
    %254 = vxpose.xlu0.b32.cont [13/16] %v224, 128
    %255 = vxpose.xlu0.b32.cont [14/16] %v229, 128
    %256 = vxpose.xlu0.b32.cont [15/16] %v234, 128
    %257 = vxpose.xlu0.b32.end [16/16] %v239, 128
    %v258 = vpop.trf.xlu0
    %v259 = vpop.trf.xlu0
    %v260 = vpop.trf.xlu0
    %v261 = vpop.trf.xlu0
    %v262 = vpop.trf.xlu0
    %v263 = vpop.trf.xlu0
    %v264 = vpop.trf.xlu0
    %v265 = vpop.trf.xlu0
    %v266 = vpop.trf.xlu0
    %v267 = vpop.trf.xlu0
    %v268 = vpop.trf.xlu0
    %v269 = vpop.trf.xlu0
    %v270 = vpop.trf.xlu0
    %v271 = vpop.trf.xlu0
    %v272 = vpop.trf.xlu0
    %v273 = vpop.trf.xlu0
    %s274 = sld [smem:[#allocation2]]
    %v275 = vstv %s274
    %v276 = vadd.f32 %v258, %v275
    %s277 = sld [smem:[#allocation2 + $0x1]]
    %v278 = vstv %s277
    %v279 = vadd.f32 %v258, %v278
    %s280 = sld [smem:[#allocation2 + $0x2]]
    %v281 = vstv %s280
    %v282 = vadd.f32 %v258, %v281
    %v283 = vmax.f32 %v276, 0.0
    %vm284 = vcmp.ne.f32.partialorder %v276, %v276
    %v285 = vadd.f32 %v276, 0.0
    %v286 = vand.u32 2147483647, %v276
    %v287 = vsub.f32 0.0, %v286
    %v288 = vmul.f32 %v287, 1.442695
    %v289 = vpow.pop %v288
    %v290 = vadd.f32 %v289, 1.0
    %v291 = vlog2.pop %v290
    %v292 = vmul.f32 %v291, 0.6931472
    %v293 = vmul.f32 -0.5, %v289
    %v294 = vadd.f32 %v293, 1.0
    %v295 = vmul.f32 %v294, %v289
    %v296 = vand.u32 2147483647, %v289
    %vm297 = vcmp.lt.f32.partialorder %v296, 0.0004427343
    %v298 = vsel %vm297, %v295, %v292
    %v299 = vadd.f32 %v283, %v298
    %v300 = vsel %vm284, %v285, %v299
    %v301 = vadd.f32 %v300, 2.0
    %302 = vst [vmem:[#allocation5] sm:$0x1] %v301
    %303 = vst [vmem:[#allocation5] sm:$0x2] %v279
    %v304 = vmax.f32 %v282, 0.0
    %vm305 = vcmp.ne.f32.partialorder %v282, %v282
    %v306 = vadd.f32 %v282, 0.0
    %v307 = vand.u32 2147483647, %v282
    %v308 = vsub.f32 0.0, %v307
    %v309 = vmul.f32 %v308, 1.442695
    %v310 = vpow.pop %v309
    %v311 = vadd.f32 %v310, 1.0
    %v312 = vlog2.pop %v311
    %v313 = vmul.f32 %v312, 0.6931472
    %v314 = vmul.f32 -0.5, %v310
    %v315 = vadd.f32 %v314, 1.0
    %v316 = vmul.f32 %v315, %v310
    %v317 = vand.u32 2147483647, %v310
    %vm318 = vcmp.lt.f32.partialorder %v317, 0.0004427343
    %v319 = vsel %vm318, %v316, %v313
    %v320 = vadd.f32 %v304, %v319
    %v321 = vsel %vm305, %v306, %v320
    %322 = vst [vmem:[#allocation5] sm:$0x4] %v321
    // Predicated region
    $region18: #{_param_proj_call.1} parent=1 // pred_check
      _
    $region19: #{_param_proj_call.1} parent=1 // pred_check_branch
      %324 = sbr.rel (0) target = $region21
    $region20: #{_param_proj_call.1} parent=1 // pred_region
      %s326 = ssub.s32 64, 64
      %327 = vsyncadd [#allocation3], %s326
      %s329 = sshll.u32 [#allocation5], 4
      %s330 = int_to_ptr.vmem [resolvable:$true] %s329
      %332 = dma.vmem_to_hbm [thread:$0]  %s330, 64, %s3, [#allocation3]
    $region21: #{_param_proj_call.1} parent=1 // pred_fallthru
      _
    // Predicated region
    $region22: #{_param_proj_call.1} parent=1 // pred_check
      _
    $region23: #{_param_proj_call.1} parent=1 // pred_check_branch
      %334 = sbr.rel (0) target = $region25
    $region24: #{_param_proj_call.1} parent=1 // pred_region
      %335 = dma.done [#allocation3], 64
    $region25: #{_param_proj_call.1} parent=1 // pred_fallthru
      _
    %336 = vsyncpa [#allocation3], 1
    %337 = vsyncpa [#allocation4], 1

</llo_original>
